<compile_context>
chip_gen: v7x
topology: tpu7x:2x2x1
jax: 0.10.0
libtpu: 0.0.40
codegen_flags: <defaults>
</compile_context>

<pallas_src>
from functools import partial

import jax
import jax.numpy as jnp
from jax.experimental import pallas as pl
from jax.experimental.pallas import tpu as pltpu


def _mlp_kernel(x_ref, w1_ref, w2_ref, w3_ref, b3_ref, o_ref):
    """Fused 3-layer (k=1 Conv1d) MLP on one (B_t, C_in, L_t) block.

    x_ref : (B_t, C_in, Lt) f32      o_ref : (B_t, D_out, Lt) f32
    w*_ref: (out_ch, in_ch) f32      b3_ref: (D_out, 1) f32
    Channels sit on sublanes, L on the 128-lane axis; weights are resident.
    """
    w1 = w1_ref[...]
    w2 = w2_ref[...]
    w3 = w3_ref[...]
    b3 = b3_ref[...]
    # B_t is a small static int -> unrolled at trace time; each row is an
    # independent (channels x lanes) matmul chain.
    for i in range(x_ref.shape[0]):
        x = x_ref[i]                                                 # (C_in, Lt)
        h = jnp.dot(w1, x, preferred_element_type=jnp.float32)      # (H1, Lt)
        h = jnp.maximum(h, 0.0)
        h = jnp.dot(w2, h, preferred_element_type=jnp.float32)      # (H2, Lt)
        h = jnp.maximum(h, 0.0)
        out = jnp.dot(w3, h, preferred_element_type=jnp.float32)    # (D_out, Lt)
        out = out + b3                                               # bias broadcast over lanes
        o_ref[i] = out.astype(o_ref.dtype)


def _round_up(x, m):
    return -(-x // m) * m


def generic_mlp_forward(x_ncl, w1, w2, w3, b3, *, l_tile_max=512, b_tile_max=8):
    """GenericMLP forward (use_conv=True, kernel_size=1 Conv1d stack).

    x_ncl : (N, C_in, L) float32   -- PyTorch Conv1d NCL layout.
    w1    : (H1, C_in)             -- layer-1 weight == Conv1d weight (O, C, 1) squeezed.
    w2    : (H2, H1)
    w3    : (D_out, H2)
    b3    : (D_out,)               -- output-layer bias.
    Returns (N, D_out, L) float32.
    """
    n, c_in, length = x_ncl.shape
    h1, h2, d_out = w1.shape[0], w2.shape[0], w3.shape[0]

    # Tiny parameters: cast once (negligible traffic). The big activation stream
    # stays f32 and untouched -- no standalone astype / pad / slice ops in HBM.
    w1c = w1.astype(jnp.float32)
    w2c = w2.astype(jnp.float32)
    w3c = w3.astype(jnp.float32)
    b3c = b3.reshape(d_out, 1).astype(jnp.float32)

    # Fixed lane-dense L tile; the last block may be partial (cdiv grid).
    l_tile = min(l_tile_max, _round_up(length, 128))
    l_steps = pl.cdiv(length, l_tile)

    # Batch blocking: amortize per-grid-step overhead for small-L / large-N
    # calls, while keeping >= 2 parallel steps for the v7x megacore.
    min_steps = min(2, n * l_steps)
    b_tile = 1
    for cand in range(min(n, b_tile_max), 0, -1):
        if n % cand == 0 and (n // cand) * l_steps >= min_steps:
            b_tile = cand
            break
    b_steps = n // b_tile

    # Still a 1-step grid but L spans more than one lane group -> split L so
    # both v7x TensorCores get a block (no effect on single-TC v5e/v6e).
    if b_steps * l_steps == 1 and l_tile > 128:
        l_tile = _round_up(l_tile // 2, 128)
        l_steps = pl.cdiv(length, l_tile)

    grid = (b_steps, l_steps)

    return pl.pallas_call(
        _mlp_kernel,
        out_shape=jax.ShapeDtypeStruct((n, d_out, length), jnp.float32),
        grid_spec=pltpu.PrefetchScalarGridSpec(
            num_scalar_prefetch=0,
            grid=grid,
            in_specs=[
                # Activations: batch rows on the leading dim, channels on
                # sublanes, L on the 128-lane axis.
                pl.BlockSpec((b_tile, c_in, l_tile), lambda b, l: (b, 0, l)),
                # Weights / bias: full blocks with constant index -> fetched
                # once, resident in VMEM for the whole grid.
                pl.BlockSpec((h1, c_in), lambda b, l: (0, 0)),
                pl.BlockSpec((h2, h1), lambda b, l: (0, 0)),
                pl.BlockSpec((d_out, h2), lambda b, l: (0, 0)),
                pl.BlockSpec((d_out, 1), lambda b, l: (0, 0)),
            ],
            out_specs=pl.BlockSpec((b_tile, d_out, l_tile), lambda b, l: (b, 0, l)),
        ),
        compiler_params=pltpu.CompilerParams(
            dimension_semantics=("parallel", "parallel"),
        ),
    )(x_ncl.astype(jnp.float32), w1c, w2c, w3c, b3c)


def _reference_forward(x_ncl, w1, w2, w3, b3):
    # Pure f32 reference (highest precision) of the same GenericMLP config.
    ein = partial(jnp.einsum, precision=jax.lax.Precision.HIGHEST)
    h = jnp.maximum(ein('oc,ncl->nol', w1, x_ncl), 0.0)
    h = jnp.maximum(ein('oc,ncl->nol', w2, h), 0.0)
    return ein('oc,ncl->nol', w3, h) + b3[None, :, None]


if __name__ == "__main__":
    # Module config
    input_dim, hidden_dims, output_dim = 4, [32, 32], 8
    batch, length = 2, 256

    key = jax.random.PRNGKey(0)
    kx, k1, k2, k3, kb = jax.random.split(key, 5)

    # Conv1d weights stored (out_channels, in_channels) == PyTorch (O, C, 1) squeezed.
    w1 = jax.random.normal(k1, (hidden_dims[0], input_dim), jnp.float32) * 0.1
    w2 = jax.random.normal(k2, (hidden_dims[1], hidden_dims[0]), jnp.float32) * 0.1
    w3 = jax.random.normal(k3, (output_dim, hidden_dims[1]), jnp.float32) * 0.1
    b3 = jax.random.normal(kb, (output_dim,), jnp.float32) * 0.1

    # 1) Typical 3DDETR-head shape (N, C_in, L) = (2, 4, 256).
    x = jax.random.normal(kx, (batch, input_dim, length), jnp.float32)
    y = jax.block_until_ready(generic_mlp_forward(x, w1, w2, w3, b3))
    y_ref = _reference_forward(x, w1, w2, w3, b3)
    assert y.shape == (batch, output_dim, length)
    assert jnp.allclose(y, y_ref, atol=1e-2, rtol=1e-2), "mismatch (lane-aligned L)"

    # 2) Ragged L: exercises the partial last block (no wrapper pad / slice).
    x2 = jax.random.normal(kx, (batch, input_dim, 200), jnp.float32)
    y2 = jax.block_until_ready(generic_mlp_forward(x2, w1, w2, w3, b3))
    y2_ref = _reference_forward(x2, w1, w2, w3, b3)
    assert y2.shape == (batch, output_dim, 200)
    assert jnp.allclose(y2, y2_ref, atol=1e-2, rtol=1e-2), "mismatch (ragged L)"

    # 3) Large-N / small-L: exercises batch blocking (several rows per grid step).
    x3 = jax.random.normal(kx, (8, input_dim, 128), jnp.float32)
    y3 = jax.block_until_ready(generic_mlp_forward(x3, w1, w2, w3, b3))
    y3_ref = _reference_forward(x3, w1, w2, w3, b3)
    assert y3.shape == (8, output_dim, 128)
    assert jnp.allclose(y3, y3_ref, atol=1e-2, rtol=1e-2), "mismatch (batch-blocked)"

    print("KERNEL_OK")
</pallas_src>

<mosaic_0001>
module attributes {stable_mosaic.version = 11 : i64} {
  func.func @_mlp_kernel(%arg0: i32, %arg1: i32, %arg2: memref<1x4x256xf32, #tpu.memory_space<vmem>>, %arg3: memref<32x4xf32, #tpu.memory_space<vmem>>, %arg4: memref<32x32xf32, #tpu.memory_space<vmem>>, %arg5: memref<8x32xf32, #tpu.memory_space<vmem>>, %arg6: memref<8x1xf32, #tpu.memory_space<vmem>>, %arg7: memref<1x8x256xf32, #tpu.memory_space<vmem>>) attributes {dimension_semantics = [#tpu.dimension_semantics<parallel>, #tpu.dimension_semantics<parallel>], iteration_bounds = array<i64: 2, 1>, scalar_prefetch = 0 : i64, scratch_operands = 0 : i64, tpu.core_type = #tpu.core_type<tc>, window_params = [{transform_indices = @transform_0, window_bounds = array<i64: 1, 4, 256>}, {pipeline_mode = #tpu.pipeline_mode<synchronous>, transform_indices = @transform_1, window_bounds = array<i64: 32, 4>}, {pipeline_mode = #tpu.pipeline_mode<synchronous>, transform_indices = @transform_2, window_bounds = array<i64: 32, 32>}, {pipeline_mode = #tpu.pipeline_mode<synchronous>, transform_indices = @transform_3, window_bounds = array<i64: 8, 32>}, {pipeline_mode = #tpu.pipeline_mode<synchronous>, transform_indices = @transform_4, window_bounds = array<i64: 8, 1>}, {transform_indices = @transform_5, window_bounds = array<i64: 1, 8, 256>}]} {
    %c0 = arith.constant 0 : index
    %c0_0 = arith.constant 0 : index
    %0 = vector.load %arg3[%c0, %c0_0] : memref<32x4xf32, #tpu.memory_space<vmem>>, vector<32x4xf32>
    %c0_1 = arith.constant 0 : index
    %c0_2 = arith.constant 0 : index
    %1 = vector.load %arg4[%c0_1, %c0_2] : memref<32x32xf32, #tpu.memory_space<vmem>>, vector<32x32xf32>
    %c0_3 = arith.constant 0 : index
    %c0_4 = arith.constant 0 : index
    %2 = vector.load %arg5[%c0_3, %c0_4] : memref<8x32xf32, #tpu.memory_space<vmem>>, vector<8x32xf32>
    %c0_5 = arith.constant 0 : index
    %c0_6 = arith.constant 0 : index
    %3 = vector.load %arg6[%c0_5, %c0_6] : memref<8x1xf32, #tpu.memory_space<vmem>>, vector<8x1xf32>
    %c0_7 = arith.constant 0 : index
    %c0_8 = arith.constant 0 : index
    %c0_9 = arith.constant 0 : index
    %4 = vector.load %arg2[%c0_7, %c0_8, %c0_9] : memref<1x4x256xf32, #tpu.memory_space<vmem>>, vector<1x4x256xf32>
    %5 = vector.shape_cast %4 : vector<1x4x256xf32> to vector<4x256xf32>
    %cst = arith.constant dense<0.000000e+00> : vector<32x256xf32>
    %6 = tpu.matmul %0, %5, %cst {dimension_numbers = #tpu.dot_dimension_numbers<[1], [0], [0], [1], [0, 0, 1, 1], [], []>} : vector<32x4xf32>, vector<4x256xf32>, vector<32x256xf32> -> vector<32x256xf32>
    %cst_10 = arith.constant 0.000000e+00 : f32
    %7 = vector.broadcast %cst_10 : f32 to vector<32x256xf32>
    %8 = arith.maximumf %6, %7 : vector<32x256xf32>
    %cst_11 = arith.constant dense<0.000000e+00> : vector<32x256xf32>
    %9 = tpu.matmul %1, %8, %cst_11 {dimension_numbers = #tpu.dot_dimension_numbers<[1], [0], [0], [1], [0, 0, 1, 1], [], []>} : vector<32x32xf32>, vector<32x256xf32>, vector<32x256xf32> -> vector<32x256xf32>
    %cst_12 = arith.constant 0.000000e+00 : f32
    %10 = vector.broadcast %cst_12 : f32 to vector<32x256xf32>
    %11 = arith.maximumf %9, %10 : vector<32x256xf32>
    %cst_13 = arith.constant dense<0.000000e+00> : vector<8x256xf32>
    %12 = tpu.matmul %2, %11, %cst_13 {dimension_numbers = #tpu.dot_dimension_numbers<[1], [0], [0], [1], [0, 0, 1, 1], [], []>} : vector<8x32xf32>, vector<32x256xf32>, vector<8x256xf32> -> vector<8x256xf32>
    %13 = vector.broadcast %3 : vector<8x1xf32> to vector<8x256xf32>
    %14 = arith.addf %12, %13 : vector<8x256xf32>
    %c0_14 = arith.constant 0 : index
    %c0_15 = arith.constant 0 : index
    %c0_16 = arith.constant 0 : index
    %15 = vector.load %arg7[%c0_14, %c0_15, %c0_16] : memref<1x8x256xf32, #tpu.memory_space<vmem>>, vector<1x8x256xf32>
    %16 = vector.shape_cast %15 : vector<1x8x256xf32> to vector<8x256xf32>
    %17 = vector.shape_cast %14 : vector<8x256xf32> to vector<1x8x256xf32>
    tpu.vector_store %arg7[%c0_14, %c0_15, %c0_16], %17 {strides = array<i32>} : memref<1x8x256xf32, #tpu.memory_space<vmem>>, vector<1x8x256xf32>,
    return
  }
  func.func @transform_0(%arg0: i32, %arg1: i32) -> (i32, i32, i32) {
    %c0_i32 = arith.constant 0 : i32
    %c0_i32_0 = arith.constant 0 : i32
    return %arg0, %c0_i32, %arg1 : i32, i32, i32
  }
  func.func @transform_1(%arg0: i32, %arg1: i32) -> (i32, i32) {
    %c0_i32 = arith.constant 0 : i32
    %c0_i32_0 = arith.constant 0 : i32
    %c0_i32_1 = arith.constant 0 : i32
    return %c0_i32, %c0_i32_0 : i32, i32
  }
  func.func @transform_2(%arg0: i32, %arg1: i32) -> (i32, i32) {
    %c0_i32 = arith.constant 0 : i32
    %c0_i32_0 = arith.constant 0 : i32
    %c0_i32_1 = arith.constant 0 : i32
    return %c0_i32, %c0_i32_0 : i32, i32
  }
  func.func @transform_3(%arg0: i32, %arg1: i32) -> (i32, i32) {
    %c0_i32 = arith.constant 0 : i32
    %c0_i32_0 = arith.constant 0 : i32
    %c0_i32_1 = arith.constant 0 : i32
    return %c0_i32, %c0_i32_0 : i32, i32
  }
  func.func @transform_4(%arg0: i32, %arg1: i32) -> (i32, i32) {
    %c0_i32 = arith.constant 0 : i32
    %c0_i32_0 = arith.constant 0 : i32
    %c0_i32_1 = arith.constant 0 : i32
    return %c0_i32, %c0_i32_0 : i32, i32
  }
  func.func @transform_5(%arg0: i32, %arg1: i32) -> (i32, i32, i32) {
    %c0_i32 = arith.constant 0 : i32
    %c0_i32_0 = arith.constant 0 : i32
    return %arg0, %c0_i32, %arg1 : i32, i32, i32
  }
}

</mosaic_0001>

<llo_original>
// kernel: tpu_custom_call.1
$region0: #{tpu_custom_call.1}
  #allocation0 [shape = 'u32[]', space=smem, size = 0x4, offset = 0x4, fixed_abs, tag = 'smem constant byte address 0x4 - core index']
  #allocation1 [shape = 'u32[144,128]{1,0:T(1,128)}', space=vmem, size = 0x12000, scoped, tag = 'internal scratch']
  %s0 = inlined_call_operand.vmem [shape: f32[2,4,256], index: 0, kind: input, shape index: {}]
  %s1 = inlined_call_operand.vmem [shape: f32[32,4], index: 1, kind: input, shape index: {}]
  %s2 = inlined_call_operand.vmem [shape: f32[32,32], index: 2, kind: input, shape index: {}]
  %s3 = inlined_call_operand.vmem [shape: f32[8,32], index: 3, kind: input, shape index: {}]
  %s4 = inlined_call_operand.vmem [shape: f32[8,1], index: 4, kind: input, shape index: {}]
  %s5 = inlined_call_operand.hbm [shape: f32[2,8,256], index: 5, kind: output, shape index: {}]
  %s6 = sld [smem:[#allocation0]]
  $region53: #{tpu_custom_call.1} parent=0
    _
  %s8 = ssub.s32 1, %s6
  %s9 = scalar_select 0, %s8, %s6
  $region1: #{tpu_custom_call.1} parent=0
    #allocation2 [shape = 'u8[16384]{0}', space=vmem, size = 0x4000, scoped, tag = 'output window, operand 0']
    #allocation3 [shape = 's32[2]{0}', space=sflag, size = 0x8, scoped, tag = 'scoped memory for tpu_custom_call.1']
    %10 = vsyncpa [#allocation3], 0
    %s11 = scalar_lea.sflag [#allocation3], 1
    %12 = vsyncpa %s11, 0
    loop: start=0, step=1, limit=4
    $region2: #{tpu_custom_call.1} parent=1 // loop_pre_header
      _
    $region3: #{tpu_custom_call.1} parent=1 // loop_header
      %s14 = sphi 0, %s18
      %p15 = scmp.ge.s32.totalorder %s14, 4
      %s21 = sphi 0, %s33
      %s22 = sphi 0, %s29
      %s23 = sphi 0, %s21
      %s24 = sphi 0, %s22
      %s25 = sphi 0, %s23
      %s26 = sphi 0, %s24
      %s38 = sphi 0, %s40
      %s41 = sphi 0, %s38
      %s42 = sphi 0, %s41
      %s58 = sphi 0, %s42
      %s62 = sphi 0, %s62
      %s64 = sphi 0, %s62
      %s65 = sphi 0, %s64
      %s79 = sphi 0, %s65
      %s83 = sphi 0, %s83
      %s85 = sphi 0, %s83
      %s86 = sphi 0, %s85
      %s100 = sphi 0, %s86
      %s104 = sphi 0, %s104
      %s106 = sphi 0, %s104
      %s107 = sphi 0, %s106
      %s121 = sphi 0, %s107
      %s125 = sphi 0, %s125
      %s127 = sphi 0, %s125
      %s128 = sphi 0, %s127
      %s142 = sphi 0, %s128
      %s150 = sphi 0, %s152
      %s153 = sphi 0, %s150
      %s154 = sphi 0, %s153
      %s170 = sphi 0, %s154
    $region4: #{tpu_custom_call.1} parent=1 // loop_header_branch
      %17 = sbr.rel (%p15) target = $region8
    $region5: #{tpu_custom_call.1} parent=1 // loop_body
      %s19 = ssub.s32 %s14, 1
      %s20 = ssub.s32 %s14, 2
      %s27 = sadd.s32 1, %s22
      %p28 = scmp.ge.s32.totalorder %s27, 1
      %s29 = scalar_select %p28, 0, %s27
      %s30 = sadd.s32 1, %s21
      %s31 = scalar_select %p28, %s30, %s21
      %p32 = scmp.ge.s32.totalorder %s31, 2
      %s33 = scalar_select %p32, 0, %s31
      %s34 = ssub.s32 %s21, %s33
      %s35 = ssub.s32 %s22, %s29
      %s36 = sor.u32 %s34, %s35
      %p37 = scmp.eq.s32.totalorder %s36, 0
      %s39 = sadd.s32 %s38, 1
      %s40 = scalar_select %p37, %s38, %s39
      %p43 = pneg %p37
      %p44 = scmp.eq.s32.totalorder %s14, 1
      %p45 = por %p43, %p44
      %p46 = scmp.ne.s32.totalorder %s38, %s41
      %p47 = scmp.eq.s32.totalorder %s14, 0
      %p48 = por %p46, %p47
      %p49 = scmp.ne.s32.totalorder %s38, %s41
      %p50 = scmp.eq.s32.totalorder %s19, 1
      %p51 = por %p49, %p50
      %p52 = scmp.ne.s32.totalorder %s41, %s42
      %p53 = scmp.eq.s32.totalorder %s19, 0
      %p54 = por %p52, %p53
      %p55 = scmp.ne.s32.totalorder %s41, %s42
      %p56 = scmp.eq.s32.totalorder %s20, 1
      %p57 = por %p55, %p56
      %p59 = scmp.ne.s32.totalorder %s42, %s58
      %p60 = scmp.eq.s32.totalorder %s20, 0
      %p61 = por %p59, %p60
      %s63 = sadd.s32 %s62, 1
      %p66 = scmp.eq.s32.totalorder %s14, 1
      %p67 = scmp.ne.s32.totalorder %s62, %s64
      %p68 = scmp.eq.s32.totalorder %s14, 0
      %p69 = por %p67, %p68
      %p70 = scmp.ne.s32.totalorder %s62, %s64
      %p71 = scmp.eq.s32.totalorder %s19, 1
      %p72 = por %p70, %p71
      %p73 = scmp.ne.s32.totalorder %s64, %s65
      %p74 = scmp.eq.s32.totalorder %s19, 0
      %p75 = por %p73, %p74
      %p76 = scmp.ne.s32.totalorder %s64, %s65
      %p77 = scmp.eq.s32.totalorder %s20, 1
      %p78 = por %p76, %p77
      %p80 = scmp.ne.s32.totalorder %s65, %s79
      %p81 = scmp.eq.s32.totalorder %s20, 0
      %p82 = por %p80, %p81
      %s84 = sadd.s32 %s83, 1
      %p87 = scmp.eq.s32.totalorder %s14, 1
      %p88 = scmp.ne.s32.totalorder %s83, %s85
      %p89 = scmp.eq.s32.totalorder %s14, 0
      %p90 = por %p88, %p89
      %p91 = scmp.ne.s32.totalorder %s83, %s85
      %p92 = scmp.eq.s32.totalorder %s19, 1
      %p93 = por %p91, %p92
      %p94 = scmp.ne.s32.totalorder %s85, %s86
      %p95 = scmp.eq.s32.totalorder %s19, 0
      %p96 = por %p94, %p95
      %p97 = scmp.ne.s32.totalorder %s85, %s86
      %p98 = scmp.eq.s32.totalorder %s20, 1
      %p99 = por %p97, %p98
      %p101 = scmp.ne.s32.totalorder %s86, %s100
      %p102 = scmp.eq.s32.totalorder %s20, 0
      %p103 = por %p101, %p102
      %s105 = sadd.s32 %s104, 1
      %p108 = scmp.eq.s32.totalorder %s14, 1
      %p109 = scmp.ne.s32.totalorder %s104, %s106
      %p110 = scmp.eq.s32.totalorder %s14, 0
      %p111 = por %p109, %p110
      %p112 = scmp.ne.s32.totalorder %s104, %s106
      %p113 = scmp.eq.s32.totalorder %s19, 1
      %p114 = por %p112, %p113
      %p115 = scmp.ne.s32.totalorder %s106, %s107
      %p116 = scmp.eq.s32.totalorder %s19, 0
      %p117 = por %p115, %p116
      %p118 = scmp.ne.s32.totalorder %s106, %s107
      %p119 = scmp.eq.s32.totalorder %s20, 1
      %p120 = por %p118, %p119
      %p122 = scmp.ne.s32.totalorder %s107, %s121
      %p123 = scmp.eq.s32.totalorder %s20, 0
      %p124 = por %p122, %p123
      %s126 = sadd.s32 %s125, 1
      %p129 = scmp.eq.s32.totalorder %s14, 1
      %p130 = scmp.ne.s32.totalorder %s125, %s127
      %p131 = scmp.eq.s32.totalorder %s14, 0
      %p132 = por %p130, %p131
      %p133 = scmp.ne.s32.totalorder %s125, %s127
      %p134 = scmp.eq.s32.totalorder %s19, 1
      %p135 = por %p133, %p134
      %p136 = scmp.ne.s32.totalorder %s127, %s128
      %p137 = scmp.eq.s32.totalorder %s19, 0
      %p138 = por %p136, %p137
      %p139 = scmp.ne.s32.totalorder %s127, %s128
      %p140 = scmp.eq.s32.totalorder %s20, 1
      %p141 = por %p139, %p140
      %p143 = scmp.ne.s32.totalorder %s128, %s142
      %p144 = scmp.eq.s32.totalorder %s20, 0
      %p145 = por %p143, %p144
      %s146 = ssub.s32 %s21, %s33
      %s147 = ssub.s32 %s22, %s29
      %s148 = sor.u32 %s146, %s147
      %p149 = scmp.eq.s32.totalorder %s148, 0
      %s151 = sadd.s32 %s150, 1
      %s152 = scalar_select %p149, %s150, %s151
      %p155 = pneg %p149
      %p156 = scmp.eq.s32.totalorder %s14, 1
      %p157 = por %p155, %p156
      %p158 = scmp.ne.s32.totalorder %s150, %s153
      %p159 = scmp.eq.s32.totalorder %s14, 0
      %p160 = por %p158, %p159
      %p161 = scmp.ne.s32.totalorder %s150, %s153
      %p162 = scmp.eq.s32.totalorder %s19, 1
      %p163 = por %p161, %p162
      %p164 = scmp.ne.s32.totalorder %s153, %s154
      %p165 = scmp.eq.s32.totalorder %s19, 0
      %p166 = por %p164, %p165
      %p167 = scmp.ne.s32.totalorder %s153, %s154
      %p168 = scmp.eq.s32.totalorder %s20, 1
      %p169 = por %p167, %p168
      %p171 = scmp.ne.s32.totalorder %s154, %s170
      %p172 = scmp.eq.s32.totalorder %s20, 0
      %p173 = por %p171, %p172
      %p174 = scmp.le.s32.totalorder 1, %s14
      %p175 = scmp.lt.s32.totalorder %s14, 3
      %p176 = pnand %p174, %p175
      %p177 = pneg %p176
      // Predicated region
      $region9: #{tpu_custom_call.1} parent=5 // pred_check
        _
      $region10: #{tpu_custom_call.1} parent=5 // pred_check_branch
        %179 = sbr.rel (%p176) target = $region12
      $region11: #{tpu_custom_call.1} parent=5 // pred_region
        %s180 = ssub.s32 %s14, 1
        // Predicated region
        $region13: #{tpu_custom_call.1} parent=11 // pred_check
          %p181 = pneg %p75
        $region14: #{tpu_custom_call.1} parent=11 // pred_check_branch
          %183 = sbr.rel (%p181) target = $region16
        $region15: #{tpu_custom_call.1} parent=11 // pred_region
          _
        $region16: #{tpu_custom_call.1} parent=11 // pred_fallthru
          _
        // Predicated region
        $region17: #{tpu_custom_call.1} parent=11 // pred_check
          %p184 = pneg %p96
        $region18: #{tpu_custom_call.1} parent=11 // pred_check_branch
          %186 = sbr.rel (%p184) target = $region20
        $region19: #{tpu_custom_call.1} parent=11 // pred_region
          _
        $region20: #{tpu_custom_call.1} parent=11 // pred_fallthru
          _
        // Predicated region
        $region21: #{tpu_custom_call.1} parent=11 // pred_check
          %p187 = pneg %p117
        $region22: #{tpu_custom_call.1} parent=11 // pred_check_branch
          %189 = sbr.rel (%p187) target = $region24
        $region23: #{tpu_custom_call.1} parent=11 // pred_region
          _
        $region24: #{tpu_custom_call.1} parent=11 // pred_fallthru
          _
        // Predicated region
        $region25: #{tpu_custom_call.1} parent=11 // pred_check
          %p190 = pneg %p138
        $region26: #{tpu_custom_call.1} parent=11 // pred_check_branch
          %192 = sbr.rel (%p190) target = $region28
        $region27: #{tpu_custom_call.1} parent=11 // pred_region
          _
        $region28: #{tpu_custom_call.1} parent=11 // pred_fallthru
          _
      $region12: #{tpu_custom_call.1} parent=5 // pred_fallthru
        _
      %p193 = scmp.lt.s32.totalorder %s14, 2
      // Predicated region
      $region29: #{tpu_custom_call.1} parent=5 // pred_check
        %p194 = pneg %p193
      $region30: #{tpu_custom_call.1} parent=5 // pred_check_branch
        %196 = sbr.rel (%p194) target = $region32
      $region31: #{tpu_custom_call.1} parent=5 // pred_region
        // Predicated region
        $region33: #{tpu_custom_call.1} parent=31 // pred_check
          %p197 = pneg %p48
        $region34: #{tpu_custom_call.1} parent=31 // pred_check_branch
          %199 = sbr.rel (%p197) target = $region36
        $region35: #{tpu_custom_call.1} parent=31 // pred_region
          %s200 = smul.u32 2, %s22
          %p201 = scmp.lt.s32.totalorder %s21, 1
          %s202 = scalar_select %p201, %s21, 1
          %p203 = scmp.lt.s32.totalorder %s200, 1
          %s204 = scalar_select %p203, %s200, 1
          %s205 = smul.addr %s202, 2
          %s206 = sadd.s32 %s204, %s205
          %s207 = smul.addr %s206, 4
          %s208 = scalar_lea.vmem %s0, %s207
          %s209 = smul.u32 2, %s22
        $region36: #{tpu_custom_call.1} parent=31 // pred_fallthru
          _
      $region32: #{tpu_custom_call.1} parent=5 // pred_fallthru
        _
      %p210 = scmp.le.s32.totalorder 1, %s14
      %p211 = scmp.lt.s32.totalorder %s14, 3
      %p212 = pnand %p210, %p211
      %p213 = pneg %p212
      // Predicated region
      $region37: #{tpu_custom_call.1} parent=5 // pred_check
        _
      $region38: #{tpu_custom_call.1} parent=5 // pred_check_branch
        %215 = sbr.rel (%p212) target = $region40
      $region39: #{tpu_custom_call.1} parent=5 // pred_region
        %s216 = ssub.s32 %s14, 1
        %s217 = smul.u32 2, %s24
        %p218 = scmp.lt.s32.totalorder %s23, 1
        %s219 = scalar_select %p218, %s23, 1
        %p220 = scmp.lt.s32.totalorder %s217, 1
        %s221 = scalar_select %p220, %s217, 1
        %s222 = smul.addr %s219, 2
        %s223 = sadd.s32 %s221, %s222
        %s224 = smul.addr %s223, 4
        %s225 = scalar_lea.vmem %s0, %s224
        %p226 = pneg %p54
        %p227 = pneg %p51
        %p228 = pneg %p75
        %p229 = pneg %p72
        %p230 = pneg %p96
        %p231 = pneg %p93
        %p232 = pneg %p117
        %p233 = pneg %p114
        %p234 = pneg %p138
        %p235 = pneg %p135
        %p236 = pneg %p166
        %p237 = pneg %p163
        %s238 = sand.u32 %s153, 1
        %s239 = scalar_lea.sflag [#allocation3], %s238
        %s240 = sand.u32 %s153, 1
        %s241 = smul.addr %s240, 16
        %s242 = scalar_lea.vmem [#allocation2], %s241
        %s243 = smul.u32 2, %s24
        %p244 = scmp.lt.s32.totalorder %s23, 1
        %s245 = scalar_select %p244, %s23, 1
        %p246 = scmp.lt.s32.totalorder %s243, 1
        %s247 = scalar_select %p246, %s243, 1
        %s248 = smul.addr %s245, 2
        %s249 = sadd.s32 %s247, %s248
        %s250 = smul.addr %s249, 4
        %s251 = scalar_lea.vmem %s0, %s250
        %s252 = smul.u32 2, %s24
        %s253 = smul.u32 2, %s24
        %v254 = vld [vmem:[%s1] sm:$0xff]
        %v255 = vld [vmem:[%s1 + $0x8] sm:$0xff]
        %v256 = vld [vmem:[%s1 + $0x10] sm:$0xff]
        %v257 = vld [vmem:[%s1 + $0x18] sm:$0xff]
        %v258 = vld [vmem:[%s2] sm:$0xff]
        %v259 = vld [vmem:[%s2 + $0x8] sm:$0xff]
        %v260 = vld [vmem:[%s2 + $0x10] sm:$0xff]
        %v261 = vld [vmem:[%s2 + $0x18] sm:$0xff]
        %v262 = vld [vmem:[%s3] sm:$0xff]
        %v263 = vld [vmem:[%s4] sm:$0xff]
        %v264 = vld [vmem:[%s251] sm:$0xff]
        %v266 = vcombine.high %v264, %v264
        %vm267 = vcmask 31744
        %v269 = vsel %vm267, %v254, 0
        %v272 = vsel %vm267, %v255, 0
        %v275 = vsel %vm267, %v256, 0
        %v278 = vsel %vm267, %v257, 0
        %vm280 = vcmask 1043456
        %v281 = vsel %vm280, %v264, 0
        %v283 = vsel %vm280, %v266, 0
        %285 = vmatprep.subr.mxu0 %v283
        %286 = vmatpush1.msra.mxu0 %v281
        %287 = vmatprep.subr.mxu0 0.0
        %288 = vmatpush1.msra.mxu0 0.0
        %289 = vmatprep.subr.mxu0 0.0
        %290 = vmatpush1.msra.mxu0 0.0
        %291 = vmatprep.subr.mxu0 0.0
        %292 = vmatpush1.msra.mxu0 0.0
        %293 = vmatprep.subr.mxu0 0.0
        %294 = vmatpush1.msra.mxu0 0.0
        %295 = vmatprep.subr.mxu0 0.0
        %296 = vmatpush1.msra.mxu0 0.0
        %297 = vmatprep.subr.mxu0 0.0
        %298 = vmatpush1.msra.mxu0 0.0
        %299 = vmatprep.subr.mxu0 0.0
        %300 = vmatpush1.msra.mxu0 0.0
        %301 = vmatprep.subr.mxu0 0.0
        %302 = vmatpush1.msra.mxu0 0.0
        %303 = vmatprep.subr.mxu0 0.0
        %304 = vmatpush1.msra.mxu0 0.0
        %305 = vmatprep.subr.mxu0 0.0
        %306 = vmatpush1.msra.mxu0 0.0
        %307 = vmatprep.subr.mxu0 0.0
        %308 = vmatpush1.msra.mxu0 0.0
        %309 = vmatprep.subr.mxu0 0.0
        %310 = vmatpush1.msra.mxu0 0.0
        %311 = vmatprep.subr.mxu0 0.0
        %312 = vmatpush1.msra.mxu0 0.0
        %313 = vmatprep.subr.mxu0 0.0
        %314 = vmatpush1.msra.mxu0 0.0
        %315 = vmatprep.subr.mxu0 0.0
        %316 = vmatpush1.msra.mxu0 0.0
        %317 = vmatprep.subr.mxu0 0.0
        %318 = vmatpush1.msra.mxu0 0.0
        %319 = vmatprep.subr.mxu0 0.0
        %320 = vmatpush1.msra.mxu0 0.0
        %321 = vmatprep.subr.mxu0 0.0
        %322 = vmatpush1.msra.mxu0 0.0
        %323 = vmatprep.subr.mxu0 0.0
        %324 = vmatpush1.msra.mxu0 0.0
        %325 = vmatprep.subr.mxu0 0.0
        %326 = vmatpush1.msra.mxu0 0.0
        %327 = vmatprep.subr.mxu0 0.0
        %328 = vmatpush1.msra.mxu0 0.0
        %329 = vmatprep.subr.mxu0 0.0
        %330 = vmatpush1.msra.mxu0 0.0
        %331 = vmatprep.subr.mxu0 0.0
        %332 = vmatpush1.msra.mxu0 0.0
        %333 = vmatprep.subr.mxu0 0.0
        %334 = vmatpush1.msra.mxu0 0.0
        %335 = vmatprep.subr.mxu0 0.0
        %336 = vmatpush1.msra.mxu0 0.0
        %337 = vmatprep.subr.mxu0 0.0
        %338 = vmatpush1.msra.mxu0 0.0
        %339 = vmatprep.subr.mxu0 0.0
        %340 = vmatpush1.msra.mxu0 0.0
        %341 = vmatprep.subr.mxu0 0.0
        %342 = vmatpush1.msra.mxu0 0.0
        %343 = vmatprep.subr.mxu0 0.0
        %344 = vmatpush1.msra.mxu0 0.0
        %345 = vmatprep.subr.mxu0 0.0
        %346 = vmatpush1.msra.mxu0 0.0
        %347 = vmatprep.subr.mxu0 0.0
        %348 = vmatpush1.msra.mxu0 0.0
        %349 = vmatprep.mubr.f32.mxu0 0.0
        %350 = vmatmul.mubr.f32.gmra.mrb[0].mxu0 %v269
        %v351 = vpop.f32.mrb[0].mxu0
        %v352 = vadd.f32 0.0, %v351
        %v353 = vpop.f32.mrb[0].mxu0
        %v354 = vadd.f32 0.0, %v353
        %355 = vmatprep.mubr.f32.mxu0 0.0
        %356 = vmatmul.mubr.f32.gmra.mrb[0].mxu0 %v272
        %v357 = vpop.f32.mrb[0].mxu0
        %v358 = vadd.f32 0.0, %v357
        %v359 = vpop.f32.mrb[0].mxu0
        %v360 = vadd.f32 0.0, %v359
        %361 = vmatprep.mubr.f32.mxu0 0.0
        %362 = vmatmul.mubr.f32.gmra.mrb[0].mxu0 %v275
        %v363 = vpop.f32.mrb[0].mxu0
        %v364 = vadd.f32 0.0, %v363
        %v365 = vpop.f32.mrb[0].mxu0
        %v366 = vadd.f32 0.0, %v365
        %367 = vmatprep.mubr.f32.mxu0 0.0
        %368 = vmatmul.mubr.f32.gmra.mrb[0].mxu0 %v278
        %v369 = vpop.f32.mrb[0].mxu0
        %v370 = vadd.f32 0.0, %v369
        %v371 = vpop.f32.mrb[0].mxu0
        %v372 = vadd.f32 0.0, %v371
        %373 = vdwg.mxu0
        %v374 = vmax.f32 %v352, 0.0
        %v375 = vmax.f32 %v354, 0.0
        %v376 = vmax.f32 %v358, 0.0
        %v377 = vmax.f32 %v360, 0.0
        %v378 = vmax.f32 %v364, 0.0
        %v379 = vmax.f32 %v366, 0.0
        %v380 = vmax.f32 %v370, 0.0
        %v381 = vmax.f32 %v372, 0.0
        %vm382 = vcmask 261120
        %v384 = vsel %vm382, %v258, 0
        %v387 = vsel %vm382, %v259, 0
        %v390 = vsel %vm382, %v260, 0
        %v393 = vsel %vm382, %v261, 0
        %395 = vmatprep.subr.mxu0 %v375
        %396 = vmatpush1.msra.mxu0 %v374
        %397 = vmatprep.subr.mxu0 %v377
        %398 = vmatpush1.msra.mxu0 %v376
        %399 = vmatprep.subr.mxu0 %v379
        %400 = vmatpush1.msra.mxu0 %v378
        %401 = vmatprep.subr.mxu0 %v381
        %402 = vmatpush1.msra.mxu0 %v380
        %403 = vmatprep.subr.mxu0 0.0
        %404 = vmatpush1.msra.mxu0 0.0
        %405 = vmatprep.subr.mxu0 0.0
        %406 = vmatpush1.msra.mxu0 0.0
        %407 = vmatprep.subr.mxu0 0.0
        %408 = vmatpush1.msra.mxu0 0.0
        %409 = vmatprep.subr.mxu0 0.0
        %410 = vmatpush1.msra.mxu0 0.0
        %411 = vmatprep.subr.mxu0 0.0
        %412 = vmatpush1.msra.mxu0 0.0
        %413 = vmatprep.subr.mxu0 0.0
        %414 = vmatpush1.msra.mxu0 0.0
        %415 = vmatprep.subr.mxu0 0.0
        %416 = vmatpush1.msra.mxu0 0.0
        %417 = vmatprep.subr.mxu0 0.0
        %418 = vmatpush1.msra.mxu0 0.0
        %419 = vmatprep.subr.mxu0 0.0
        %420 = vmatpush1.msra.mxu0 0.0
        %421 = vmatprep.subr.mxu0 0.0
        %422 = vmatpush1.msra.mxu0 0.0
        %423 = vmatprep.subr.mxu0 0.0
        %424 = vmatpush1.msra.mxu0 0.0
        %425 = vmatprep.subr.mxu0 0.0
        %426 = vmatpush1.msra.mxu0 0.0
        %427 = vmatprep.subr.mxu0 0.0
        %428 = vmatpush1.msra.mxu0 0.0
        %429 = vmatprep.subr.mxu0 0.0
        %430 = vmatpush1.msra.mxu0 0.0
        %431 = vmatprep.subr.mxu0 0.0
        %432 = vmatpush1.msra.mxu0 0.0
        %433 = vmatprep.subr.mxu0 0.0
        %434 = vmatpush1.msra.mxu0 0.0
        %435 = vmatprep.subr.mxu0 0.0
        %436 = vmatpush1.msra.mxu0 0.0
        %437 = vmatprep.subr.mxu0 0.0
        %438 = vmatpush1.msra.mxu0 0.0
        %439 = vmatprep.subr.mxu0 0.0
        %440 = vmatpush1.msra.mxu0 0.0
        %441 = vmatprep.subr.mxu0 0.0
        %442 = vmatpush1.msra.mxu0 0.0
        %443 = vmatprep.subr.mxu0 0.0
        %444 = vmatpush1.msra.mxu0 0.0
        %445 = vmatprep.subr.mxu0 0.0
        %446 = vmatpush1.msra.mxu0 0.0
        %447 = vmatprep.subr.mxu0 0.0
        %448 = vmatpush1.msra.mxu0 0.0
        %449 = vmatprep.subr.mxu0 0.0
        %450 = vmatpush1.msra.mxu0 0.0
        %451 = vmatprep.subr.mxu0 0.0
        %452 = vmatpush1.msra.mxu0 0.0
        %453 = vmatprep.subr.mxu0 0.0
        %454 = vmatpush1.msra.mxu0 0.0
        %455 = vmatprep.subr.mxu0 0.0
        %456 = vmatpush1.msra.mxu0 0.0
        %457 = vmatprep.subr.mxu0 0.0
        %458 = vmatpush1.msra.mxu0 0.0
        %459 = vmatprep.mubr.f32.mxu0 0.0
        %460 = vmatmul.mubr.f32.gmra.mrb[0].mxu0 %v384
        %v461 = vpop.f32.mrb[0].mxu0
        %v462 = vadd.f32 0.0, %v461
        %v463 = vpop.f32.mrb[0].mxu0
        %v464 = vadd.f32 0.0, %v463
        %465 = vmatprep.mubr.f32.mxu0 0.0
        %466 = vmatmul.mubr.f32.gmra.mrb[0].mxu0 %v387
        %v467 = vpop.f32.mrb[0].mxu0
        %v468 = vadd.f32 0.0, %v467
        %v469 = vpop.f32.mrb[0].mxu0
        %v470 = vadd.f32 0.0, %v469
        %471 = vmatprep.mubr.f32.mxu0 0.0
        %472 = vmatmul.mubr.f32.gmra.mrb[0].mxu0 %v390
        %v473 = vpop.f32.mrb[0].mxu0
        %v474 = vadd.f32 0.0, %v473
        %v475 = vpop.f32.mrb[0].mxu0
        %v476 = vadd.f32 0.0, %v475
        %477 = vmatprep.mubr.f32.mxu0 0.0
        %478 = vmatmul.mubr.f32.gmra.mrb[0].mxu0 %v393
        %v479 = vpop.f32.mrb[0].mxu0
        %v480 = vadd.f32 0.0, %v479
        %v481 = vpop.f32.mrb[0].mxu0
        %v482 = vadd.f32 0.0, %v481
        %483 = vdwg.mxu0
        %v484 = vmax.f32 %v462, 0.0
        %v485 = vmax.f32 %v464, 0.0
        %v486 = vmax.f32 %v468, 0.0
        %v487 = vmax.f32 %v470, 0.0
        %v488 = vmax.f32 %v474, 0.0
        %v489 = vmax.f32 %v476, 0.0
        %v490 = vmax.f32 %v480, 0.0
        %v491 = vmax.f32 %v482, 0.0
        %493 = vset.pattern.permute.xlu0 0
        %494 = vperm.xlu0 %493, %v263
        %v495 = vpop.permute.xlu0 %494
        %v498 = vsel %vm382, %v262, 0
        %500 = vmatprep.subr.mxu0 %v485
        %501 = vmatpush1.msra.mxu0 %v484
        %502 = vmatprep.subr.mxu0 %v487
        %503 = vmatpush1.msra.mxu0 %v486
        %504 = vmatprep.subr.mxu0 %v489
        %505 = vmatpush1.msra.mxu0 %v488
        %506 = vmatprep.subr.mxu0 %v491
        %507 = vmatpush1.msra.mxu0 %v490
        %508 = vmatprep.subr.mxu0 0.0
        %509 = vmatpush1.msra.mxu0 0.0
        %510 = vmatprep.subr.mxu0 0.0
        %511 = vmatpush1.msra.mxu0 0.0
        %512 = vmatprep.subr.mxu0 0.0
        %513 = vmatpush1.msra.mxu0 0.0
        %514 = vmatprep.subr.mxu0 0.0
        %515 = vmatpush1.msra.mxu0 0.0
        %516 = vmatprep.subr.mxu0 0.0
        %517 = vmatpush1.msra.mxu0 0.0
        %518 = vmatprep.subr.mxu0 0.0
        %519 = vmatpush1.msra.mxu0 0.0
        %520 = vmatprep.subr.mxu0 0.0
        %521 = vmatpush1.msra.mxu0 0.0
        %522 = vmatprep.subr.mxu0 0.0
        %523 = vmatpush1.msra.mxu0 0.0
        %524 = vmatprep.subr.mxu0 0.0
        %525 = vmatpush1.msra.mxu0 0.0
        %526 = vmatprep.subr.mxu0 0.0
        %527 = vmatpush1.msra.mxu0 0.0
        %528 = vmatprep.subr.mxu0 0.0
        %529 = vmatpush1.msra.mxu0 0.0
        %530 = vmatprep.subr.mxu0 0.0
        %531 = vmatpush1.msra.mxu0 0.0
        %532 = vmatprep.subr.mxu0 0.0
        %533 = vmatpush1.msra.mxu0 0.0
        %534 = vmatprep.subr.mxu0 0.0
        %535 = vmatpush1.msra.mxu0 0.0
        %536 = vmatprep.subr.mxu0 0.0
        %537 = vmatpush1.msra.mxu0 0.0
        %538 = vmatprep.subr.mxu0 0.0
        %539 = vmatpush1.msra.mxu0 0.0
        %540 = vmatprep.subr.mxu0 0.0
        %541 = vmatpush1.msra.mxu0 0.0
        %542 = vmatprep.subr.mxu0 0.0
        %543 = vmatpush1.msra.mxu0 0.0
        %544 = vmatprep.subr.mxu0 0.0
        %545 = vmatpush1.msra.mxu0 0.0
        %546 = vmatprep.subr.mxu0 0.0
        %547 = vmatpush1.msra.mxu0 0.0
        %548 = vmatprep.subr.mxu0 0.0
        %549 = vmatpush1.msra.mxu0 0.0
        %550 = vmatprep.subr.mxu0 0.0
        %551 = vmatpush1.msra.mxu0 0.0
        %552 = vmatprep.subr.mxu0 0.0
        %553 = vmatpush1.msra.mxu0 0.0
        %554 = vmatprep.subr.mxu0 0.0
        %555 = vmatpush1.msra.mxu0 0.0
        %556 = vmatprep.subr.mxu0 0.0
        %557 = vmatpush1.msra.mxu0 0.0
        %558 = vmatprep.subr.mxu0 0.0
        %559 = vmatpush1.msra.mxu0 0.0
        %560 = vmatprep.subr.mxu0 0.0
        %561 = vmatpush1.msra.mxu0 0.0
        %562 = vmatprep.subr.mxu0 0.0
        %563 = vmatpush1.msra.mxu0 0.0
        %564 = vmatprep.mubr.f32.mxu0 0.0
        %565 = vmatmul.mubr.f32.gmra.mrb[0].mxu0 %v498
        %v566 = vpop.f32.mrb[0].mxu0
        %v567 = vadd.f32 %v495, %v566
        %v568 = vpop.f32.mrb[0].mxu0
        %v569 = vadd.f32 %v495, %v568
        %570 = vdwg.mxu0
        %571 = vst [vmem:[%s242] sm:$0xff] %v567
        %572 = vst [vmem:[%s242 + $0x8] sm:$0xff] %v569
        %s573 = sand.u32 %s153, 1
        %s574 = scalar_lea.sflag [#allocation3], %s573
        %s575 = sand.u32 %s153, 1
        %s576 = smul.addr %s575, 16
        %s577 = scalar_lea.vmem [#allocation2], %s576
        // Predicated region
        $region41: #{tpu_custom_call.1} parent=39 // pred_check
          %p578 = pneg %p163
        $region42: #{tpu_custom_call.1} parent=39 // pred_check_branch
          %580 = sbr.rel (%p578) target = $region44
        $region43: #{tpu_custom_call.1} parent=39 // pred_region
          %s581 = smul.u32 2, %s24
          %s583 = ssub.s32 256, 256
          %584 = vsyncadd %s574, %s583
          %s585 = smul.addr %s23, 2
          %s586 = sadd.s32 %s581, %s585
          %s587 = smul.addr %s586, 128
          %s588 = scalar_lea.hbm %s5, %s587
          %s590 = sshll.u32 %s577, 4
          %s591 = int_to_ptr.vmem [resolvable:$true] %s590
          %593 = dma.vmem_to_hbm [thread:$0]  %s591, 256, %s588, %s574
        $region44: #{tpu_custom_call.1} parent=39 // pred_fallthru
          _
      $region40: #{tpu_custom_call.1} parent=5 // pred_fallthru
        _
      %p594 = scmp.le.s32.totalorder 2, %s14
      // Predicated region
      $region45: #{tpu_custom_call.1} parent=5 // pred_check
        %p595 = pneg %p594
      $region46: #{tpu_custom_call.1} parent=5 // pred_check_branch
        %597 = sbr.rel (%p595) target = $region48
      $region47: #{tpu_custom_call.1} parent=5 // pred_region
        %s598 = ssub.s32 %s14, 2
        // Predicated region
        $region49: #{tpu_custom_call.1} parent=47 // pred_check
          %p599 = pneg %p169
        $region50: #{tpu_custom_call.1} parent=47 // pred_check_branch
          %601 = sbr.rel (%p599) target = $region52
        $region51: #{tpu_custom_call.1} parent=47 // pred_region
          %s602 = sand.u32 %s154, 1
          %s603 = scalar_lea.sflag [#allocation3], %s602
          %s604 = sand.u32 %s154, 1
          %s605 = smul.addr %s604, 16
          %s606 = scalar_lea.vmem [#allocation2], %s605
          %607 = dma.done %s603, 256
        $region52: #{tpu_custom_call.1} parent=47 // pred_fallthru
          _
      $region48: #{tpu_custom_call.1} parent=5 // pred_fallthru
        _
    $region6: #{tpu_custom_call.1} parent=1 // loop_footer
      %s18 = sadd.s32 1, %s14
    $region7: #{tpu_custom_call.1} parent=1 // loop_footer_branch
      %13 = sbr.rel target = $region3
    $region8: #{tpu_custom_call.1} parent=1 // loop_exit
      _
    %608 = vsyncpa [#allocation3], 1
    %s609 = scalar_lea.sflag [#allocation3], 1
    %610 = vsyncpa %s609, 1

</llo_original>
